<compile_context>
chip_gen: v5e
topology: v5e:2x2
jax: 0.10.0
libtpu: 0.0.40
codegen_flags: <defaults>
</compile_context>

<pallas_src>
import jax
import jax.numpy as jnp
from jax import lax
from jax.experimental import pallas as pl
from jax.experimental.pallas import tpu as pltpu

LANE = 128


def make_product_loss_kernel(gamma, code_length, num_train, num_classes, d_pad,
                             c=1.0, d=0.01, focal_alpha=0.25, focal_gamma=2.0):
    """Returns a Pallas kernel closure reproducing ProductLoss.forward."""

    def kernel(codes_ref, s_ref, cls_ref, out_ref):
        L = code_length
        codes = codes_ref[...]            # [B, 4L] = [u | V_omega | ui | ul]
        u = codes[:, 0 * L:1 * L]
        vw = codes[:, 1 * L:2 * L]
        ui = codes[:, 2 * L:3 * L]
        ul = codes[:, 3 * L:4 * L]
        s = s_ref[...]                    # [B, B]
        batch_size = u.shape[0]

        # ---- square loss: (u @ V_omega.T - code_length * S) ** 2 ----------
        # dot_general contracting last dims of both operands: no transpose.
        uv = lax.dot_general(u, vw,
                             dimension_numbers=(((1,), (1,)), ((), ())),
                             preferred_element_type=jnp.float32)   # [B, B]
        square_loss = (uv - code_length * s) ** 2

        # ---- quantization loss: gamma * (V_omega - u) ** 2 ----------------
        quantization_loss = gamma * (vw - u) ** 2

        loss = (jnp.sum(square_loss) + jnp.sum(quantization_loss)) / (
            num_train * batch_size)

        # ---- FocalLoss (reproducing the PyTorch semantics:
        #      F.binary_cross_entropy_with_logits has reduction='mean', so
        #      the result is mean(w) * mean(bce)) -------------------------
        cls = cls_ref[...]                # [N, 2*d_pad] = [logits | targets]
        x = cls[:, :d_pad]
        t = cls[:, d_pad:]
        n = x.shape[0]
        valid = (lax.broadcasted_iota(jnp.int32, x.shape, 1)
                 < num_classes).astype(jnp.float32)

        e = jnp.exp(-jnp.abs(x))                       # single shared EUP exp
        inv1pe = pl.reciprocal(1.0 + e, approx=False)  # 1 / (1 + e)
        p = jnp.where(x >= 0.0, inv1pe, e * inv1pe)    # sigmoid(x), stable
        pt = p * t + (1.0 - p) * (1.0 - t)
        q = 1.0 - pt
        if focal_gamma == 2.0:
            q_pow = q * q                              # VPU, no pow/exp/log
        else:
            q_pow = q ** focal_gamma
        w = (focal_alpha * t + (1.0 - focal_alpha) * (1.0 - t)) * q_pow
        # numerically stable BCE-with-logits, reusing e = exp(-|x|)
        bce = jnp.maximum(x, 0.0) - x * t + jnp.log1p(e)

        denom = jnp.float32(n * num_classes)
        bce_mean = jnp.sum(bce * valid) / denom
        w_mean = jnp.sum(w * valid) / denom
        c_loss = w_mean * bce_mean                     # == mean(w * bce_mean)

        # ---- d loss: sum((ui - ul) ** 2) -----------------------------------
        d_loss = jnp.sum((ui - ul) ** 2)

        out_ref[0, 0] = loss + c * c_loss + d * d_loss

    return kernel


def product_loss_pallas(u, V_omega, S, classify, train_label, ui, ul,
                        *, gamma, code_length, num_train):
    B, L = u.shape
    N, num_classes = classify.shape
    d_pad = pl.cdiv(num_classes, LANE) * LANE

    # Pack the four [B, L] code tensors into one lane-dense [B, 4L] slab.
    codes = jnp.concatenate([u, V_omega, ui, ul], axis=1)          # [8, 128]
    # Pad logits / targets to 128 lanes and pack into one slab.
    x_pad = jnp.pad(classify, ((0, 0), (0, d_pad - num_classes)))
    t_pad = jnp.pad(train_label.astype(jnp.float32),
                    ((0, 0), (0, d_pad - num_classes)))
    cls = jnp.concatenate([x_pad, t_pad], axis=1)                  # [8, 256]

    kernel = make_product_loss_kernel(gamma, code_length, num_train,
                                      num_classes, d_pad)

    flops = (2 * B * B * L        # matmul
             + 6 * B * B          # square-loss elementwise + reduce
             + 5 * B * L          # quantization loss
             + 25 * N * d_pad     # focal loss elementwise + reduces
             + 3 * B * L)         # d loss
    transcendentals = 3 * N * d_pad            # exp, log1p, reciprocal
    bytes_accessed = 4 * (B * 4 * L + B * B + N * 2 * d_pad) + 4
    cost = pl.CostEstimate(flops=int(flops),
                           transcendentals=int(transcendentals),
                           bytes_accessed=int(bytes_accessed))

    vmem = pl.BlockSpec(memory_space=pltpu.MemorySpace.VMEM)
    out = pl.pallas_call(
        kernel,
        out_shape=jax.ShapeDtypeStruct((1, 1), jnp.float32),
        in_specs=[vmem, vmem, vmem],
        out_specs=pl.BlockSpec(memory_space=pltpu.MemorySpace.SMEM),
        cost_estimate=cost,
    )(codes, S, cls)
    return out[0, 0]


def product_loss_ref(u, V_omega, S, classify, train_label, ui, ul,
                     *, gamma, code_length, num_train, c=1.0, d=0.01):
    """Pure-JAX reference mirroring the PyTorch module."""
    batch_size = u.shape[0]
    square_loss = (u @ V_omega.T - code_length * S) ** 2
    quantization_loss = gamma * (V_omega - u) ** 2
    loss = (square_loss.sum() + quantization_loss.sum()) / (num_train * batch_size)
    # FocalLoss (mean(w * mean(bce)) as in the PyTorch code)
    alpha, fgamma = 0.25, 2.0
    x, t = classify, train_label
    p = jax.nn.sigmoid(x)
    pt = p * t + (1 - p) * (1 - t)
    w = (alpha * t + (1 - alpha) * (1 - t)) * (1 - pt) ** fgamma
    bce = jnp.maximum(x, 0.0) - x * t + jnp.log1p(jnp.exp(-jnp.abs(x)))
    c_loss = jnp.mean(w * jnp.mean(bce))
    d_loss = jnp.sum((ui - ul) ** 2)
    return loss + c * c_loss + d * d_loss


if __name__ == "__main__":
    # Module hyper-parameters (constructor args of ProductLoss / FocalLoss)
    gamma = 200.0        # quantization weight
    code_length = 32     # hash code length
    num_train = 500      # number of training samples
    num_classes = 21     # FocalLoss default

    batch_size = 8

    key = jax.random.PRNGKey(0)
    k = jax.random.split(key, 7)
    u = jax.random.normal(k[0], (batch_size, code_length), jnp.float32)
    V_omega = jnp.sign(jax.random.normal(k[1], (batch_size, code_length), jnp.float32))
    S = (jax.random.uniform(k[2], (batch_size, batch_size)) > 0.5).astype(jnp.float32)
    classify = jax.random.normal(k[3], (batch_size, num_classes), jnp.float32)
    train_label = (jax.random.uniform(k[4], (batch_size, num_classes)) > 0.8).astype(jnp.float32)
    ui = jax.random.normal(k[5], (batch_size, code_length), jnp.float32)
    ul = jax.random.normal(k[6], (batch_size, code_length), jnp.float32)

    loss = product_loss_pallas(u, V_omega, S, classify, train_label, ui, ul,
                               gamma=gamma, code_length=code_length,
                               num_train=num_train)
    loss = jax.block_until_ready(loss)

    ref = product_loss_ref(u, V_omega, S, classify, train_label, ui, ul,
                           gamma=gamma, code_length=code_length,
                           num_train=num_train)
    assert jnp.allclose(loss, ref, rtol=1e-5, atol=1e-5), (loss, ref)

    print("KERNEL_OK")
</pallas_src>

<mosaic_0001>
module attributes {stable_mosaic.version = 11 : i64} {
  func.func @kernel(%arg0: memref<8x128xf32, #tpu.memory_space<vmem>>, %arg1: memref<8x8xf32, #tpu.memory_space<vmem>>, %arg2: memref<8x256xf32, #tpu.memory_space<vmem>>, %arg3: memref<1x1xf32, #tpu.memory_space<smem>>) attributes {dimension_semantics = [], scalar_prefetch = 0 : i64, scratch_operands = 0 : i64, tpu.core_type = #tpu.core_type<tc>} {
    %c0 = arith.constant 0 : index
    %c0_0 = arith.constant 0 : index
    %0 = vector.load %arg0[%c0, %c0_0] : memref<8x128xf32, #tpu.memory_space<vmem>>, vector<8x128xf32>
    %1 = vector.extract_strided_slice %0 {offsets = [0, 0], sizes = [8, 32], strides = [1, 1]} : vector<8x128xf32> to vector<8x32xf32>
    %2 = vector.extract_strided_slice %0 {offsets = [0, 32], sizes = [8, 32], strides = [1, 1]} : vector<8x128xf32> to vector<8x32xf32>
    %3 = vector.extract_strided_slice %0 {offsets = [0, 64], sizes = [8, 32], strides = [1, 1]} : vector<8x128xf32> to vector<8x32xf32>
    %4 = vector.extract_strided_slice %0 {offsets = [0, 96], sizes = [8, 32], strides = [1, 1]} : vector<8x128xf32> to vector<8x32xf32>
    %c0_1 = arith.constant 0 : index
    %c0_2 = arith.constant 0 : index
    %5 = vector.load %arg1[%c0_1, %c0_2] : memref<8x8xf32, #tpu.memory_space<vmem>>, vector<8x8xf32>
    %cst = arith.constant dense<0.000000e+00> : vector<8x8xf32>
    %6 = tpu.matmul %1, %2, %cst {dimension_numbers = #tpu.dot_dimension_numbers<[1], [1], [0], [0], [0, 0, 1, 0], [], []>} : vector<8x32xf32>, vector<8x32xf32>, vector<8x8xf32> -> vector<8x8xf32>
    %cst_3 = arith.constant 3.200000e+01 : f32
    %7 = vector.broadcast %cst_3 : f32 to vector<8x8xf32>
    %8 = arith.mulf %7, %5 : vector<8x8xf32>
    %9 = arith.subf %6, %8 : vector<8x8xf32>
    %10 = arith.mulf %9, %9 : vector<8x8xf32>
    %11 = arith.subf %2, %1 : vector<8x32xf32>
    %12 = arith.mulf %11, %11 : vector<8x32xf32>
    %cst_4 = arith.constant 2.000000e+02 : f32
    %13 = vector.broadcast %cst_4 : f32 to vector<8x32xf32>
    %14 = arith.mulf %13, %12 : vector<8x32xf32>
    %15 = vector.shape_cast %10 : vector<8x8xf32> to vector<1x8x8xf32>
    %cst_5 = arith.constant dense<0.000000e+00> : vector<1xf32>
    %16 = vector.multi_reduction <add>, %15, %cst_5 [1, 2] : vector<1x8x8xf32> to vector<1xf32>
    %17 = vector.shape_cast %16 : vector<1xf32> to vector<1x1x1xf32>
    %18 = vector.extract %17[0, 0, 0] : f32 from vector<1x1x1xf32>
    %19 = vector.shape_cast %14 : vector<8x32xf32> to vector<1x8x32xf32>
    %cst_6 = arith.constant dense<0.000000e+00> : vector<1xf32>
    %20 = vector.multi_reduction <add>, %19, %cst_6 [1, 2] : vector<1x8x32xf32> to vector<1xf32>
    %21 = vector.shape_cast %20 : vector<1xf32> to vector<1x1x1xf32>
    %22 = vector.extract %21[0, 0, 0] : f32 from vector<1x1x1xf32>
    %23 = arith.addf %18, %22 : f32
    %cst_7 = arith.constant 4.000000e+03 : f32
    %24 = arith.divf %23, %cst_7 : f32
    %c0_8 = arith.constant 0 : index
    %c0_9 = arith.constant 0 : index
    %25 = vector.load %arg2[%c0_8, %c0_9] : memref<8x256xf32, #tpu.memory_space<vmem>>, vector<8x256xf32>
    %26 = vector.extract_strided_slice %25 {offsets = [0, 0], sizes = [8, 128], strides = [1, 1]} : vector<8x256xf32> to vector<8x128xf32>
    %27 = vector.extract_strided_slice %25 {offsets = [0, 128], sizes = [8, 128], strides = [1, 1]} : vector<8x256xf32> to vector<8x128xf32>
    %28 = tpu.iota {dimensions = array<i32: 1>} : vector<8x128xi32>
    %c21_i32 = arith.constant 21 : i32
    %29 = vector.broadcast %c21_i32 : i32 to vector<8x128xi32>
    %30 = arith.cmpi slt, %28, %29 : vector<8x128xi32>
    %31 = arith.extui %30 : vector<8x128xi1> to vector<8x128xi32>
    %32 = arith.sitofp %31 : vector<8x128xi32> to vector<8x128xf32>
    %33 = math.absf %26 : vector<8x128xf32>
    %cst_10 = arith.constant 0.000000e+00 : f32
    %34 = vector.broadcast %cst_10 : f32 to vector<8x128xf32>
    %35 = arith.subf %34, %33 : vector<8x128xf32>
    %36 = math.exp %35 : vector<8x128xf32>
    %cst_11 = arith.constant 1.000000e+00 : f32
    %37 = vector.broadcast %cst_11 : f32 to vector<8x128xf32>
    %38 = arith.addf %37, %36 : vector<8x128xf32>
    %39 = tpu.reciprocal %38 : vector<8x128xf32> -> vector<8x128xf32>
    %cst_12 = arith.constant 0.000000e+00 : f32
    %40 = vector.broadcast %cst_12 : f32 to vector<8x128xf32>
    %41 = arith.cmpf oge, %26, %40 : vector<8x128xf32>
    %42 = arith.mulf %36, %39 : vector<8x128xf32>
    %43 = arith.select %41, %39, %42 : vector<8x128xi1>, vector<8x128xf32>
    %44 = arith.mulf %43, %27 : vector<8x128xf32>
    %cst_13 = arith.constant 1.000000e+00 : f32
    %45 = vector.broadcast %cst_13 : f32 to vector<8x128xf32>
    %46 = arith.subf %45, %43 : vector<8x128xf32>
    %cst_14 = arith.constant 1.000000e+00 : f32
    %47 = vector.broadcast %cst_14 : f32 to vector<8x128xf32>
    %48 = arith.subf %47, %27 : vector<8x128xf32>
    %49 = arith.mulf %46, %48 : vector<8x128xf32>
    %50 = arith.addf %44, %49 : vector<8x128xf32>
    %cst_15 = arith.constant 1.000000e+00 : f32
    %51 = vector.broadcast %cst_15 : f32 to vector<8x128xf32>
    %52 = arith.subf %51, %50 : vector<8x128xf32>
    %53 = arith.mulf %52, %52 : vector<8x128xf32>
    %cst_16 = arith.constant 2.500000e-01 : f32
    %54 = vector.broadcast %cst_16 : f32 to vector<8x128xf32>
    %55 = arith.mulf %54, %27 : vector<8x128xf32>
    %cst_17 = arith.constant 1.000000e+00 : f32
    %56 = vector.broadcast %cst_17 : f32 to vector<8x128xf32>
    %57 = arith.subf %56, %27 : vector<8x128xf32>
    %cst_18 = arith.constant 7.500000e-01 : f32
    %58 = vector.broadcast %cst_18 : f32 to vector<8x128xf32>
    %59 = arith.mulf %58, %57 : vector<8x128xf32>
    %60 = arith.addf %55, %59 : vector<8x128xf32>
    %61 = arith.mulf %60, %53 : vector<8x128xf32>
    %cst_19 = arith.constant 0.000000e+00 : f32
    %62 = vector.broadcast %cst_19 : f32 to vector<8x128xf32>
    %63 = arith.maximumf %26, %62 : vector<8x128xf32>
    %64 = arith.mulf %26, %27 : vector<8x128xf32>
    %65 = arith.subf %63, %64 : vector<8x128xf32>
    %66 = math.log1p %36 : vector<8x128xf32>
    %67 = arith.addf %65, %66 : vector<8x128xf32>
    %68 = arith.mulf %67, %32 : vector<8x128xf32>
    %69 = vector.shape_cast %68 : vector<8x128xf32> to vector<1x8x128xf32>
    %cst_20 = arith.constant dense<0.000000e+00> : vector<1xf32>
    %70 = vector.multi_reduction <add>, %69, %cst_20 [1, 2] : vector<1x8x128xf32> to vector<1xf32>
    %71 = vector.shape_cast %70 : vector<1xf32> to vector<1x1x1xf32>
    %72 = vector.extract %71[0, 0, 0] : f32 from vector<1x1x1xf32>
    %cst_21 = arith.constant 1.680000e+02 : f32
    %73 = arith.divf %72, %cst_21 : f32
    %74 = arith.mulf %61, %32 : vector<8x128xf32>
    %75 = vector.shape_cast %74 : vector<8x128xf32> to vector<1x8x128xf32>
    %cst_22 = arith.constant dense<0.000000e+00> : vector<1xf32>
    %76 = vector.multi_reduction <add>, %75, %cst_22 [1, 2] : vector<1x8x128xf32> to vector<1xf32>
    %77 = vector.shape_cast %76 : vector<1xf32> to vector<1x1x1xf32>
    %78 = vector.extract %77[0, 0, 0] : f32 from vector<1x1x1xf32>
    %cst_23 = arith.constant 1.680000e+02 : f32
    %79 = arith.divf %78, %cst_23 : f32
    %80 = arith.mulf %79, %73 : f32
    %81 = arith.subf %3, %4 : vector<8x32xf32>
    %82 = arith.mulf %81, %81 : vector<8x32xf32>
    %83 = vector.shape_cast %82 : vector<8x32xf32> to vector<1x8x32xf32>
    %cst_24 = arith.constant dense<0.000000e+00> : vector<1xf32>
    %84 = vector.multi_reduction <add>, %83, %cst_24 [1, 2] : vector<1x8x32xf32> to vector<1xf32>
    %85 = vector.shape_cast %84 : vector<1xf32> to vector<1x1x1xf32>
    %86 = vector.extract %85[0, 0, 0] : f32 from vector<1x1x1xf32>
    %cst_25 = arith.constant 1.000000e+00 : f32
    %87 = arith.mulf %cst_25, %80 : f32
    %88 = arith.addf %24, %87 : f32
    %cst_26 = arith.constant 0.00999999977 : f32
    %89 = arith.mulf %cst_26, %86 : f32
    %90 = arith.addf %88, %89 : f32
    %c0_27 = arith.constant 0 : index
    %c0_28 = arith.constant 0 : index
    %91 = memref.load %arg3[%c0_27, %c0_28] : memref<1x1xf32, #tpu.memory_space<smem>>
    memref.store %90, %arg3[%c0_27, %c0_28] : memref<1x1xf32, #tpu.memory_space<smem>>
    return
  }
}

</mosaic_0001>

<llo_original>
// kernel: tpu_custom_call.1
$region0: #{tpu_custom_call.1}
  #allocation0 [shape = 'u32[]', space=smem, size = 0x4, offset = 0x4, fixed_abs, tag = 'smem constant byte address 0x4 - core index']
  #allocation1 [shape = 'u32[72,128]{1,0:T(1,128)}', space=vmem, size = 0x9000, scoped, tag = 'internal scratch']
  %s0 = inlined_call_operand.hbm [shape: f32[8,128], index: 0, kind: input, shape index: {}]
  %s1 = inlined_call_operand.hbm [shape: f32[8,8], index: 1, kind: input, shape index: {}]
  %s2 = inlined_call_operand.hbm [shape: f32[8,256], index: 2, kind: input, shape index: {}]
  %s3 = inlined_call_operand.hbm [shape: f32[1,1], index: 3, kind: output, shape index: {}]
  %s4 = sld [smem:[#allocation0]]
  $region34: #{tpu_custom_call.1} parent=0
    _
  %s6 = ssub.s32 1, %s4
  %s7 = scalar_select 0, %s6, %s4
  $region1: #{tpu_custom_call.1} parent=0
    #allocation2 [shape = 'u8[4096]{0}', space=vmem, size = 0x1000, scoped, tag = 'input window, operand 0, single buffered']
    #allocation3 [shape = 's32[1]{0}', space=sflag, size = 0x4, scoped, tag = 'scoped memory for tpu_custom_call.1']
    #allocation4 [shape = 's32[1]{0}', space=sflag, size = 0x4, scoped, tag = 'scoped memory for tpu_custom_call.1']
    #allocation5 [shape = 'u8[4096]{0}', space=vmem, size = 0x1000, scoped, tag = 'input window, operand 1, single buffered']
    #allocation6 [shape = 's32[1]{0}', space=sflag, size = 0x4, scoped, tag = 'scoped memory for tpu_custom_call.1']
    #allocation7 [shape = 'u8[8192]{0}', space=vmem, size = 0x2000, scoped, tag = 'input window, operand 2, single buffered']
    #allocation8 [shape = 'u8[512]{0}', space=smem, size = 0x200, scoped, tag = 'output window, operand 0, single buffered']
    %8 = vsyncpa [#allocation3], 0
    %9 = vsyncpa [#allocation6], 0
    %10 = vsyncpa [#allocation4], 0
    // Predicated region
    $region2: #{tpu_custom_call.1} parent=1 // pred_check
      _
    $region3: #{tpu_custom_call.1} parent=1 // pred_check_branch
      %12 = sbr.rel (0) target = $region5
    $region4: #{tpu_custom_call.1} parent=1 // pred_region
      %14 = vsyncadd [#allocation3], 0
      %s16 = sshll.u32 %s0, 4
      %s17 = int_to_ptr.hbm [resolvable:$true] %s16
      %s18 = sshll.u32 [#allocation2], 4
      %s19 = int_to_ptr.vmem [resolvable:$true] %s18
      %21 = dma.hbm_to_vmem [thread:$0]  %s17, 128, %s19, [#allocation3]
    $region5: #{tpu_custom_call.1} parent=1 // pred_fallthru
      _
    // Predicated region
    $region6: #{tpu_custom_call.1} parent=1 // pred_check
      _
    $region7: #{tpu_custom_call.1} parent=1 // pred_check_branch
      %23 = sbr.rel (0) target = $region9
    $region8: #{tpu_custom_call.1} parent=1 // pred_region
      %25 = vsyncadd [#allocation6], 0
      %s27 = sshll.u32 %s1, 4
      %s28 = int_to_ptr.hbm [resolvable:$true] %s27
      %s29 = sshll.u32 [#allocation5], 4
      %s30 = int_to_ptr.vmem [resolvable:$true] %s29
      %32 = dma.hbm_to_vmem [thread:$0]  %s28, 128, %s30, [#allocation6]
    $region9: #{tpu_custom_call.1} parent=1 // pred_fallthru
      _
    // Predicated region
    $region10: #{tpu_custom_call.1} parent=1 // pred_check
      _
    $region11: #{tpu_custom_call.1} parent=1 // pred_check_branch
      %34 = sbr.rel (0) target = $region13
    $region12: #{tpu_custom_call.1} parent=1 // pred_region
      %36 = vsyncadd [#allocation6], 0
      %s38 = sshll.u32 %s2, 4
      %s39 = int_to_ptr.hbm [resolvable:$true] %s38
      %s40 = sshll.u32 [#allocation7], 4
      %s41 = int_to_ptr.vmem [resolvable:$true] %s40
      %43 = dma.hbm_to_vmem [thread:$0]  %s39, 256, %s41, [#allocation6]
    $region13: #{tpu_custom_call.1} parent=1 // pred_fallthru
      _
    // Predicated region
    $region14: #{tpu_custom_call.1} parent=1 // pred_check
      _
    $region15: #{tpu_custom_call.1} parent=1 // pred_check_branch
      %45 = sbr.rel (0) target = $region17
    $region16: #{tpu_custom_call.1} parent=1 // pred_region
      %47 = dma.done [#allocation3], 128
    $region17: #{tpu_custom_call.1} parent=1 // pred_fallthru
      _
    // Predicated region
    $region18: #{tpu_custom_call.1} parent=1 // pred_check
      _
    $region19: #{tpu_custom_call.1} parent=1 // pred_check_branch
      %49 = sbr.rel (0) target = $region21
    $region20: #{tpu_custom_call.1} parent=1 // pred_region
      %51 = dma.done [#allocation6], 128
    $region21: #{tpu_custom_call.1} parent=1 // pred_fallthru
      _
    // Predicated region
    $region22: #{tpu_custom_call.1} parent=1 // pred_check
      _
    $region23: #{tpu_custom_call.1} parent=1 // pred_check_branch
      %53 = sbr.rel (0) target = $region25
    $region24: #{tpu_custom_call.1} parent=1 // pred_region
      %55 = dma.done [#allocation6], 256
    $region25: #{tpu_custom_call.1} parent=1 // pred_fallthru
      _
    %v56 = vld [vmem:[#allocation2] sm:$0xff]
    %v57 = vld [vmem:[#allocation5] sm:$0xff]
    %59 = vrot.lane.b32.xlu0 %v56, 96
    %v60 = vpop.permute.xlu0 %59
    %vm61 = vcmask 261120
    %v62 = vsel %vm61, %v56, 0
    %v64 = vsel %vm61, %v60, 0
    %66 = vmatpush.xpose.msra.mxu0 0.0
    %67 = vmatpush.xpose.msra.mxu0 0.0
    %68 = vmatpush.xpose.msra.mxu0 0.0
    %69 = vmatpush.xpose.msra.mxu0 0.0
    %70 = vmatpush.xpose.msra.mxu0 0.0
    %71 = vmatpush.xpose.msra.mxu0 0.0
    %72 = vmatpush.xpose.msra.mxu0 0.0
    %73 = vmatpush.xpose.msra.mxu0 0.0
    %74 = vmatpush.xpose.msra.mxu0 0.0
    %75 = vmatpush.xpose.msra.mxu0 0.0
    %76 = vmatpush.xpose.msra.mxu0 0.0
    %77 = vmatpush.xpose.msra.mxu0 0.0
    %78 = vmatpush.xpose.msra.mxu0 0.0
    %79 = vmatpush.xpose.msra.mxu0 0.0
    %80 = vmatpush.xpose.msra.mxu0 0.0
    %81 = vmatpush.xpose.msra.mxu0 %v64
    %82 = vmatmul.f32.gmra.mxu0 %v62
    %v83 = vpop.f32.mrf.mxu0
    %v84 = vadd.f32 0.0, %v83
    %85 = vdwg.mxu0
    %v86 = vmul.f32 %v57, 32.0
    %v87 = vsub.f32 %v84, %v86
    %v88 = vmul.f32 %v87, %v87
    %89 = vrot.lane.b32.xlu0 %v56, 32
    %v90 = vpop.permute.xlu0 %89
    %v92 = vsub.f32 %v56, %v90
    %v93 = vmul.f32 %v92, %v92
    %v94 = vmul.f32 %v93, 200.0
    %vm95 = vcmask 64512
    %v96 = vsel %vm95, %v88, 0.0
    %97 = vadd.xlane.f32.xlu0 %v96
    %v98 = vpop.xlane.xlu0 %97
    %v99 = vrot.slane %v98, 4
    %v100 = vadd.f32 %v98, %v99
    %v101 = vrot.slane %v100, 2
    %v102 = vadd.f32 %v100, %v101
    %v103 = vrot.slane %v102, 1
    %v104 = vadd.f32 %v102, %v103
    %s105 = vtos %v104
    %107 = vrot.lane.b32.xlu0 %v94, 96
    %v108 = vpop.permute.xlu0 %107
    %v110 = vsel %vm61, %v108, 0.0
    %111 = vadd.xlane.f32.xlu0 %v110
    %v112 = vpop.xlane.xlu0 %111
    %v113 = vrot.slane %v112, 4
    %v114 = vadd.f32 %v112, %v113
    %v115 = vrot.slane %v114, 2
    %v116 = vadd.f32 %v114, %v115
    %v117 = vrot.slane %v116, 1
    %v118 = vadd.f32 %v116, %v117
    %s119 = vtos %v118
    %s120 = sadd.f32 %s105, %s119
    %v121 = vrcp.pop 4000.0
    %v122 = vmul.f32 4000.0, %v121
    %v123 = vsub.f32 1.0, %v122
    %v124 = vmul.f32 %v121, %v123
    %v125 = vadd.f32 %v121, %v124
    %vm126 = vweird.f32 %v121
    %v127 = vsel %vm126, %v121, %v125
    %s128 = vtos %v127
    %s129 = smul.f32 %s120, %s128
    %v130 = vld [vmem:[#allocation7] sm:$0xff]
    %v131 = vld [vmem:[#allocation7 + $0x8] sm:$0xff]
    %v132 = vlaneseq
    %v133 = vand.u32 %v132, 127
    %vm134 = vcmp.lt.s32.totalorder %v133, 21
    %v135 = vsel %vm134, 1, 0
    %v136 = vcvt.s32.f32 %v135
    %v137 = vand.u32 2147483647, %v130
    %v138 = vsub.f32 0.0, %v137
    %v139 = vmul.f32 %v138, 1.442695
    %v140 = vpow.pop %v139
    %v141 = vadd.f32 %v140, 1.0
    %v142 = vrcp.pop %v141
    %v143 = vmul.f32 %v141, %v142
    %v144 = vsub.f32 1.0, %v143
    %v145 = vmul.f32 %v142, %v144
    %v146 = vadd.f32 %v142, %v145
    %vm147 = vweird.f32 %v141
    %vm148 = vweird.f32 %v142
    %vm149 = vmor %vm147, %vm148
    %v150 = vsel %vm149, %v142, %v146
    %v151 = vand.u32 2147483647, %v141
    %vm152 = vcmp.eq.f32.partialorder %v151, 8.507059e+37
    %v153 = vand.u32 %v141, 2147483648
    %v154 = vor.u32 1.1754944e-38, %v153
    %v155 = vsel %vm152, %v154, %v150
    %vm156 = vcmp.ge.f32.partialorder %v130, 0.0
    %v157 = vmul.f32 %v140, %v155
    %v158 = vsel %vm156, %v155, %v157
    %v159 = vmul.f32 %v158, %v131
    %v160 = vsub.f32 1.0, %v158
    %v161 = vsub.f32 1.0, %v131
    %v162 = vmul.f32 %v160, %v161
    %v163 = vadd.f32 %v159, %v162
    %v164 = vsub.f32 1.0, %v163
    %v165 = vmul.f32 %v164, %v164
    %v166 = vmul.f32 %v131, 0.25
    %v167 = vmul.f32 %v161, 0.75
    %v168 = vadd.f32 %v166, %v167
    %v169 = vmul.f32 %v168, %v165
    %v170 = vmax.f32 %v130, 0.0
    %v171 = vmul.f32 %v130, %v131
    %v172 = vsub.f32 %v170, %v171
    %v173 = vadd.f32 %v140, 1.0
    %v174 = vlog2.pop %v173
    %v175 = vmul.f32 %v174, 0.6931472
    %v176 = vmul.f32 -0.5, %v140
    %v177 = vadd.f32 %v176, 1.0
    %v178 = vmul.f32 %v177, %v140
    %v179 = vand.u32 2147483647, %v140
    %vm180 = vcmp.lt.f32.partialorder %v179, 0.0004427343
    %v181 = vsel %vm180, %v178, %v175
    %v182 = vadd.f32 %v172, %v181
    %v183 = vmul.f32 %v182, %v136
    %184 = vadd.xlane.f32.xlu0 %v183
    %v185 = vpop.xlane.xlu0 %184
    %v186 = vrot.slane %v185, 4
    %v187 = vadd.f32 %v185, %v186
    %v188 = vrot.slane %v187, 2
    %v189 = vadd.f32 %v187, %v188
    %v190 = vrot.slane %v189, 1
    %v191 = vadd.f32 %v189, %v190
    %s192 = vtos %v191
    %v193 = vrcp.pop 168.0
    %v194 = vmul.f32 168.0, %v193
    %v195 = vsub.f32 1.0, %v194
    %v196 = vmul.f32 %v193, %v195
    %v197 = vadd.f32 %v193, %v196
    %vm198 = vweird.f32 %v193
    %v199 = vsel %vm198, %v193, %v197
    %s200 = vtos %v199
    %s201 = smul.f32 %s192, %s200
    %v202 = vmul.f32 %v169, %v136
    %203 = vadd.xlane.f32.xlu0 %v202
    %v204 = vpop.xlane.xlu0 %203
    %v205 = vrot.slane %v204, 4
    %v206 = vadd.f32 %v204, %v205
    %v207 = vrot.slane %v206, 2
    %v208 = vadd.f32 %v206, %v207
    %v209 = vrot.slane %v208, 1
    %v210 = vadd.f32 %v208, %v209
    %s211 = vtos %v210
    %v212 = vrcp.pop 168.0
    %v213 = vmul.f32 168.0, %v212
    %v214 = vsub.f32 1.0, %v213
    %v215 = vmul.f32 %v212, %v214
    %v216 = vadd.f32 %v212, %v215
    %vm217 = vweird.f32 %v212
    %v218 = vsel %vm217, %v212, %v216
    %s219 = vtos %v218
    %s220 = smul.f32 %s211, %s219
    %s221 = smul.f32 %s220, %s201
    %v223 = vsub.f32 %v56, %v60
    %v224 = vmul.f32 %v223, %v223
    %226 = vrot.lane.b32.xlu0 %v224, 64
    %v227 = vpop.permute.xlu0 %226
    %v229 = vsel %vm61, %v227, 0.0
    %230 = vadd.xlane.f32.xlu0 %v229
    %v231 = vpop.xlane.xlu0 %230
    %v232 = vrot.slane %v231, 4
    %v233 = vadd.f32 %v231, %v232
    %v234 = vrot.slane %v233, 2
    %v235 = vadd.f32 %v233, %v234
    %v236 = vrot.slane %v235, 1
    %v237 = vadd.f32 %v235, %v236
    %s238 = vtos %v237
    %s239 = sadd.f32 %s129, %s221
    %s240 = smul.f32 %s238, 0.01
    %s241 = sadd.f32 %s239, %s240
    %s242 = scalar_lea.smem [#allocation8], 0
    %243 = sst [smem:[%s242]] %s241
    // Predicated region
    $region26: #{tpu_custom_call.1} parent=1 // pred_check
      _
    $region27: #{tpu_custom_call.1} parent=1 // pred_check_branch
      %245 = sbr.rel (0) target = $region29
    $region28: #{tpu_custom_call.1} parent=1 // pred_region
      %247 = vsyncadd [#allocation4], 0
      %s249 = sshll.u32 %s3, 4
      %s250 = int_to_ptr.hbm [resolvable:$true] %s249
      %252 = dma.smem_to_hbm [#allocation8], 16, %s250, [#allocation4]
    $region29: #{tpu_custom_call.1} parent=1 // pred_fallthru
      _
    // Predicated region
    $region30: #{tpu_custom_call.1} parent=1 // pred_check
      _
    $region31: #{tpu_custom_call.1} parent=1 // pred_check_branch
      %254 = sbr.rel (0) target = $region33
    $region32: #{tpu_custom_call.1} parent=1 // pred_region
      %256 = dma.done [#allocation4], 16
    $region33: #{tpu_custom_call.1} parent=1 // pred_fallthru
      _
    %257 = sfence
    %258 = vsyncpa [#allocation3], 1
    %259 = vsyncpa [#allocation6], 1
    %260 = vsyncpa [#allocation4], 1

</llo_original>
